<compile_context>
chip_gen: v6e
topology: v6e:2x2x1
jax: 0.10.0
libtpu: 0.0.40
codegen_flags: <defaults>
</compile_context>

<pallas_src>
import functools

import jax
import jax.numpy as jnp
from jax import lax
from jax.experimental import pallas as pl
from jax.experimental.pallas import tpu as pltpu


def _round_up(v, m):
    return ((v + m - 1) // m) * m


MAX_TIME_CHUNK = 32   # steps per grid iteration; bounds per-chunk VMEM footprint


# ---------------------------------------------------------------------------
# Kernels
# ---------------------------------------------------------------------------
def _policy_gru_step_kernel(x_ref, h_ref, wx_ref, wh_ref, bias_ref,
                            fcw_ref, fcb_ref, u_ref, h_out_ref):
    """Single GRU step + fc + sigmoid.  x and h arrive separately (no
    wrapper-side packing); the two dots accumulate the gate pre-activations
    into one 128-lane row with column blocks [r | z | i_n | h_n]."""
    H = h_ref.shape[-1]
    h = h_ref[...]

    g = (jnp.dot(x_ref[...], wx_ref[...], preferred_element_type=jnp.float32)
         + jnp.dot(h, wh_ref[...], preferred_element_type=jnp.float32)
         + bias_ref[...])

    r = jax.nn.sigmoid(g[:, :H])
    z = jax.nn.sigmoid(g[:, H:2 * H])
    n = jnp.tanh(g[:, 2 * H:3 * H] + r * g[:, 3 * H:4 * H])
    h_new = n + z * (h - n)                      # == (1 - z) * n + z * h

    h_out_ref[...] = h_new
    logits = jnp.dot(h_new, fcw_ref[...],
                     preferred_element_type=jnp.float32) + fcb_ref[...]
    u_ref[...] = jax.nn.sigmoid(logits)


def _policy_gru_rollout_kernel(gx_ref, h0_ref, wh_ref, fcw_ref, fcb_ref,
                               u_ref, h_out_ref, h_carry, *,
                               t_total, needs_mask):
    """One grid iteration = TC GRU time steps (time-chunked rollout).

    gx_ref holds the pre-computed input projections for this chunk
    ([x@W_ir+b_r | x@W_iz+b_z | x@W_in+b_in | b_hn]); only the h-dependent
    dot is on the serial chain.  Weights stay VMEM-resident (constant
    index_map); the recurrent state is carried in a VMEM scratch across
    chunks and only written back to HBM on the last chunk."""
    H = h0_ref.shape[-1]
    TC = gx_ref.shape[0]
    c = pl.program_id(0)

    @pl.when(c == 0)
    def _():
        h_carry[...] = h0_ref[...]

    def step(i, h):
        g = gx_ref[i] + jnp.dot(h, wh_ref[...],
                                preferred_element_type=jnp.float32)
        r = jax.nn.sigmoid(g[:, :H])
        z = jax.nn.sigmoid(g[:, H:2 * H])
        n = jnp.tanh(g[:, 2 * H:3 * H] + r * g[:, 3 * H:4 * H])
        h_new = n + z * (h - n)
        if needs_mask:
            # Padded tail steps (t >= t_total) must not advance the state.
            h_new = jnp.where(c * TC + i < t_total, h_new, h)
        u_ref[i] = jax.nn.sigmoid(
            jnp.dot(h_new, fcw_ref[...], preferred_element_type=jnp.float32)
            + fcb_ref[...])
        return h_new

    h_final = lax.fori_loop(0, TC, step, h_carry[...], unroll=True)
    h_carry[...] = h_final

    @pl.when(c == pl.num_programs(0) - 1)
    def _():
        h_out_ref[...] = h_final


# ---------------------------------------------------------------------------
# Parameter init (mirrors PolicyGRU.__init__) and packing
# ---------------------------------------------------------------------------
def init_policy_gru_params(key, input_dim, hidden_dim, output_dim):
    """Shapes + init schemes of the PyTorch module (stored pre-transposed)."""
    k_ih, k_hh, k_fc = jax.random.split(key, 3)

    # gru.weight_ih_l0: (3H, I), xavier_uniform  -> stored as (I, 3H)
    w_ih = jax.nn.initializers.glorot_uniform()(
        k_ih, (3 * hidden_dim, input_dim), jnp.float32)
    # gru.weight_hh_l0: (3H, H), orthogonal      -> stored as (H, 3H)
    w_hh = jax.nn.initializers.orthogonal()(
        k_hh, (3 * hidden_dim, hidden_dim), jnp.float32)
    b_ih = jnp.zeros((1, 3 * hidden_dim), jnp.float32)
    b_hh = jnp.zeros((1, 3 * hidden_dim), jnp.float32)
    # fc.weight: (O, H), xavier_uniform          -> stored as (H, O)
    fc_w = jax.nn.initializers.glorot_uniform()(
        k_fc, (output_dim, hidden_dim), jnp.float32)
    fc_b = jnp.full((1, output_dim), -5.0, jnp.float32)

    return {
        "w_ih": jnp.transpose(w_ih),   # (I, 3H), gate order r,z,n
        "w_hh": jnp.transpose(w_hh),   # (H, 3H)
        "b_ih": b_ih,
        "b_hh": b_hh,
        "fc_w": jnp.transpose(fc_w),   # (H, O)
        "fc_b": fc_b,
    }


def pack_policy_gru_params(raw, input_dim, hidden_dim, output_dim):
    """Repack weights once for the kernels.

    w_x : (I, Gp)  column blocks [W_ir | W_iz | W_in | 0]
    w_h : (H, Gp)  column blocks [W_hr | W_hz | 0    | W_hn]
    bias: (1, Gp)  [b_ir+b_hr | b_iz+b_hz | b_in | b_hn]
    fc_w/fc_b are zero-padded to Op = round_up(O, 128) lanes (lane-dense vst).
    Gp = round_up(4H, 128).
    """
    I, H, O = input_dim, hidden_dim, output_dim
    Gp = _round_up(4 * H, 128)
    Op = _round_up(O, 128)
    w_ih, w_hh = raw["w_ih"], raw["w_hh"]
    b_ih, b_hh = raw["b_ih"][0], raw["b_hh"][0]

    w_x = jnp.zeros((I, Gp), jnp.float32)
    w_x = w_x.at[:, 0:H].set(w_ih[:, 0:H])                   # r
    w_x = w_x.at[:, H:2 * H].set(w_ih[:, H:2 * H])           # z
    w_x = w_x.at[:, 2 * H:3 * H].set(w_ih[:, 2 * H:3 * H])   # i_n

    w_h = jnp.zeros((H, Gp), jnp.float32)
    w_h = w_h.at[:, 0:H].set(w_hh[:, 0:H])                   # r
    w_h = w_h.at[:, H:2 * H].set(w_hh[:, H:2 * H])           # z
    w_h = w_h.at[:, 3 * H:4 * H].set(w_hh[:, 2 * H:3 * H])   # h_n

    bias_g = jnp.zeros((1, Gp), jnp.float32)
    bias_g = bias_g.at[0, 0:2 * H].set(b_ih[0:2 * H] + b_hh[0:2 * H])
    bias_g = bias_g.at[0, 2 * H:3 * H].set(b_ih[2 * H:3 * H])
    bias_g = bias_g.at[0, 3 * H:4 * H].set(b_hh[2 * H:3 * H])

    fc_w_pad = jnp.zeros((H, Op), jnp.float32).at[:, :O].set(raw["fc_w"])
    fc_b_pad = jnp.zeros((1, Op), jnp.float32).at[:, :O].set(raw["fc_b"])

    return {"w_x": w_x, "w_h": w_h, "bias_g": bias_g,
            "fc_w_pad": fc_w_pad, "fc_b_pad": fc_b_pad}


# ---------------------------------------------------------------------------
# Wrappers
# ---------------------------------------------------------------------------
@functools.partial(jax.jit, static_argnames=("out_dim",))
def policy_gru_forward(x, h0, packed, out_dim):
    """x: (B, I) f32, h0: (1, B, H) f32 -> (u: (B, O), h: (1, B, H))."""
    B, I = x.shape
    H = h0.shape[2]
    Gp = packed["w_h"].shape[1]
    Op = packed["fc_w_pad"].shape[1]

    x = x.astype(jnp.float32)
    h_in = h0[0].astype(jnp.float32)

    u_pad, h_new = pl.pallas_call(
        _policy_gru_step_kernel,
        out_shape=(
            jax.ShapeDtypeStruct((B, Op), jnp.float32),
            jax.ShapeDtypeStruct((B, H), jnp.float32),
        ),
        # Everything fits trivially in VMEM: no grid / tiling needed.
        in_specs=[pl.BlockSpec(memory_space=pltpu.MemorySpace.VMEM)] * 7,
        out_specs=(
            pl.BlockSpec(memory_space=pltpu.MemorySpace.VMEM),
            pl.BlockSpec(memory_space=pltpu.MemorySpace.VMEM),
        ),
        cost_estimate=pl.CostEstimate(
            flops=2 * B * (I + H) * Gp + 2 * B * H * Op + 10 * B * Gp,
            transcendentals=B * (3 * H + out_dim),
            bytes_accessed=4 * (B * I + B * H + (I + H + 1) * Gp
                                + (H + 1) * Op + B * Op + B * H)),
    )(x, h_in, packed["w_x"], packed["w_h"], packed["bias_g"],
      packed["fc_w_pad"], packed["fc_b_pad"])

    return u_pad[:, :out_dim], h_new[None, :, :]


@functools.partial(jax.jit, static_argnames=("out_dim",))
def policy_gru_rollout(xs, h0, packed, out_dim):
    """xs: (T, B, I), h0: (1, B, H) -> (u: (T, B, O), h_T: (1, B, H)).

    Equivalent to calling the module forward T times.  The x projection is
    hoisted into one big matmul; the serial recurrence runs inside a single
    pallas_call, time-chunked so grid overhead is amortized over TC steps.
    """
    T, B, I = xs.shape
    H = h0.shape[2]
    Gp = packed["w_h"].shape[1]
    Op = packed["fc_w_pad"].shape[1]
    h_in = h0[0].astype(jnp.float32)

    # Hoisted input projection + bias: one MXU-friendly (T*B, I) @ (I, Gp).
    gx = jnp.einsum("tbi,ig->tbg", xs.astype(jnp.float32),
                    packed["w_x"]) + packed["bias_g"]

    # Time chunking (grid collapses to (1,) for small T).
    TC = T if T <= MAX_TIME_CHUNK else MAX_TIME_CHUNK
    n_chunks = -(-T // TC)
    T_pad = n_chunks * TC
    needs_mask = T_pad != T
    if needs_mask:
        gx = jnp.zeros((T_pad, B, Gp), jnp.float32).at[:T].set(gx)

    kernel = functools.partial(_policy_gru_rollout_kernel,
                               t_total=T, needs_mask=needs_mask)

    grid_spec = pltpu.PrefetchScalarGridSpec(
        num_scalar_prefetch=0,
        grid=(n_chunks,),
        in_specs=[
            pl.BlockSpec((TC, B, Gp), lambda c: (c, 0, 0)),  # per-chunk g_x slab
            pl.BlockSpec((B, H), lambda c: (0, 0)),          # h0 (resident)
            pl.BlockSpec((H, Gp), lambda c: (0, 0)),         # W_h (resident)
            pl.BlockSpec((H, Op), lambda c: (0, 0)),         # fc weight (resident)
            pl.BlockSpec((1, Op), lambda c: (0, 0)),         # fc bias (resident)
        ],
        out_specs=(
            pl.BlockSpec((TC, B, Op), lambda c: (c, 0, 0)),  # per-chunk u slab
            pl.BlockSpec((B, H), lambda c: (0, 0)),          # final hidden state
        ),
        scratch_shapes=[pltpu.VMEM((B, H), jnp.float32)],    # recurrent carry
    )

    u_pad, h_last = pl.pallas_call(
        kernel,
        grid_spec=grid_spec,
        out_shape=(
            jax.ShapeDtypeStruct((T_pad, B, Op), jnp.float32),
            jax.ShapeDtypeStruct((B, H), jnp.float32),
        ),
        compiler_params=pltpu.CompilerParams(
            dimension_semantics=("arbitrary",)),             # serial recurrence
        cost_estimate=pl.CostEstimate(
            flops=T_pad * (2 * B * H * Gp + 2 * B * H * Op + 10 * B * Gp),
            transcendentals=T_pad * B * (3 * H + out_dim),
            bytes_accessed=4 * (T_pad * B * Gp + T_pad * B * Op
                                + H * Gp + (H + 1) * Op + 2 * B * H)),
    )(gx, h_in, packed["w_h"], packed["fc_w_pad"], packed["fc_b_pad"])

    return u_pad[:T, :, :out_dim], h_last[None, :, :]


# ---------------------------------------------------------------------------
# Pure-JAX reference (original unfused math)
# ---------------------------------------------------------------------------
def _reference_forward(x, h0, raw):
    h = h0[0]
    H = h.shape[-1]
    gi = x @ raw["w_ih"] + raw["b_ih"]
    gh = h @ raw["w_hh"] + raw["b_hh"]
    r = jax.nn.sigmoid(gi[:, :H] + gh[:, :H])
    z = jax.nn.sigmoid(gi[:, H:2 * H] + gh[:, H:2 * H])
    n = jnp.tanh(gi[:, 2 * H:] + r * gh[:, 2 * H:])
    h_new = (1.0 - z) * n + z * h
    u = jax.nn.sigmoid(h_new @ raw["fc_w"] + raw["fc_b"])
    return u, h_new[None]


def _reference_rollout(xs, h0, raw):
    h = h0
    us = []
    for t in range(xs.shape[0]):
        u, h = _reference_forward(xs[t], h, raw)
        us.append(u)
    return jnp.stack(us, axis=0), h


# ---------------------------------------------------------------------------
if __name__ == "__main__":
    batch, input_dim, hidden_dim, output_dim = 8, 16, 32, 8

    key = jax.random.PRNGKey(0)
    k_params, k_x, k_xs = jax.random.split(key, 3)

    raw = init_policy_gru_params(k_params, input_dim, hidden_dim, output_dim)
    packed = pack_policy_gru_params(raw, input_dim, hidden_dim, output_dim)

    x = jax.random.normal(k_x, (batch, input_dim), jnp.float32)
    h0 = jnp.zeros((1, batch, hidden_dim), jnp.float32)   # init_hidden()

    # --- single-step forward (matches the module's forward exactly) ---------
    u, h = policy_gru_forward(x, h0, packed, out_dim=output_dim)
    jax.block_until_ready((u, h))

    u_ref, h_ref = _reference_forward(x, h0, raw)
    assert u.shape == (batch, output_dim) and h.shape == (1, batch, hidden_dim)
    assert jnp.allclose(u, u_ref, atol=5e-5), "u mismatch vs reference"
    assert jnp.allclose(h, h_ref, atol=5e-5), "h mismatch vs reference"

    # --- short rollout: single time chunk, grid=(1,) -------------------------
    T1 = 6
    xs1 = jax.random.normal(k_xs, (T1, batch, input_dim), jnp.float32)
    us1, hT1 = policy_gru_rollout(xs1, h0, packed, out_dim=output_dim)
    jax.block_until_ready((us1, hT1))
    us1_ref, hT1_ref = _reference_rollout(xs1, h0, raw)
    assert us1.shape == (T1, batch, output_dim)
    assert hT1.shape == (1, batch, hidden_dim)
    assert jnp.allclose(us1, us1_ref, atol=2e-4), "rollout u mismatch (short)"
    assert jnp.allclose(hT1, hT1_ref, atol=2e-4), "rollout h mismatch (short)"

    # --- longer rollout: multiple time chunks + masked tail ------------------
    T2 = 40
    xs2 = jax.random.normal(jax.random.PRNGKey(1),
                            (T2, batch, input_dim), jnp.float32)
    us2, hT2 = policy_gru_rollout(xs2, h0, packed, out_dim=output_dim)
    jax.block_until_ready((us2, hT2))
    us2_ref, hT2_ref = _reference_rollout(xs2, h0, raw)
    assert us2.shape == (T2, batch, output_dim)
    assert jnp.allclose(us2, us2_ref, atol=2e-4), "rollout u mismatch (long)"
    assert jnp.allclose(hT2, hT2_ref, atol=2e-4), "rollout h mismatch (long)"

    print("KERNEL_OK")
</pallas_src>

<mosaic_0001>
module attributes {stable_mosaic.version = 11 : i64} {
  func.func @_policy_gru_step_kernel(%arg0: memref<8x16xf32, #tpu.memory_space<vmem>>, %arg1: memref<8x32xf32, #tpu.memory_space<vmem>>, %arg2: memref<16x128xf32, #tpu.memory_space<vmem>>, %arg3: memref<32x128xf32, #tpu.memory_space<vmem>>, %arg4: memref<1x128xf32, #tpu.memory_space<vmem>>, %arg5: memref<32x128xf32, #tpu.memory_space<vmem>>, %arg6: memref<1x128xf32, #tpu.memory_space<vmem>>, %arg7: memref<8x128xf32, #tpu.memory_space<vmem>>, %arg8: memref<8x32xf32, #tpu.memory_space<vmem>>) attributes {dimension_semantics = [], scalar_prefetch = 0 : i64, scratch_operands = 0 : i64, tpu.core_type = #tpu.core_type<tc>} {
    %c0 = arith.constant 0 : index
    %c0_0 = arith.constant 0 : index
    %0 = vector.load %arg1[%c0, %c0_0] : memref<8x32xf32, #tpu.memory_space<vmem>>, vector<8x32xf32>
    %c0_1 = arith.constant 0 : index
    %c0_2 = arith.constant 0 : index
    %1 = vector.load %arg0[%c0_1, %c0_2] : memref<8x16xf32, #tpu.memory_space<vmem>>, vector<8x16xf32>
    %c0_3 = arith.constant 0 : index
    %c0_4 = arith.constant 0 : index
    %2 = vector.load %arg2[%c0_3, %c0_4] : memref<16x128xf32, #tpu.memory_space<vmem>>, vector<16x128xf32>
    %cst = arith.constant dense<0.000000e+00> : vector<8x128xf32>
    %3 = tpu.matmul %1, %2, %cst {dimension_numbers = #tpu.dot_dimension_numbers<[1], [0], [0], [1], [0, 0, 1, 1], [], []>} : vector<8x16xf32>, vector<16x128xf32>, vector<8x128xf32> -> vector<8x128xf32>
    %c0_5 = arith.constant 0 : index
    %c0_6 = arith.constant 0 : index
    %4 = vector.load %arg3[%c0_5, %c0_6] : memref<32x128xf32, #tpu.memory_space<vmem>>, vector<32x128xf32>
    %cst_7 = arith.constant dense<0.000000e+00> : vector<8x128xf32>
    %5 = tpu.matmul %0, %4, %cst_7 {dimension_numbers = #tpu.dot_dimension_numbers<[1], [0], [0], [1], [0, 0, 1, 1], [], []>} : vector<8x32xf32>, vector<32x128xf32>, vector<8x128xf32> -> vector<8x128xf32>
    %6 = arith.addf %3, %5 : vector<8x128xf32>
    %c0_8 = arith.constant 0 : index
    %c0_9 = arith.constant 0 : index
    %7 = vector.load %arg4[%c0_8, %c0_9] : memref<1x128xf32, #tpu.memory_space<vmem>>, vector<1x128xf32>
    %8 = vector.broadcast %7 : vector<1x128xf32> to vector<8x128xf32>
    %9 = arith.addf %6, %8 : vector<8x128xf32>
    %10 = vector.extract_strided_slice %9 {offsets = [0, 0], sizes = [8, 32], strides = [1, 1]} : vector<8x128xf32> to vector<8x32xf32>
    %11 = arith.negf %10 : vector<8x32xf32>
    %12 = math.exp %11 : vector<8x32xf32>
    %cst_10 = arith.constant 1.000000e+00 : f32
    %13 = vector.broadcast %cst_10 : f32 to vector<8x32xf32>
    %14 = arith.addf %13, %12 : vector<8x32xf32>
    %15 = arith.divf %13, %14 : vector<8x32xf32>
    %16 = vector.extract_strided_slice %9 {offsets = [0, 32], sizes = [8, 32], strides = [1, 1]} : vector<8x128xf32> to vector<8x32xf32>
    %17 = arith.negf %16 : vector<8x32xf32>
    %18 = math.exp %17 : vector<8x32xf32>
    %cst_11 = arith.constant 1.000000e+00 : f32
    %19 = vector.broadcast %cst_11 : f32 to vector<8x32xf32>
    %20 = arith.addf %19, %18 : vector<8x32xf32>
    %21 = arith.divf %19, %20 : vector<8x32xf32>
    %22 = vector.extract_strided_slice %9 {offsets = [0, 64], sizes = [8, 32], strides = [1, 1]} : vector<8x128xf32> to vector<8x32xf32>
    %23 = vector.extract_strided_slice %9 {offsets = [0, 96], sizes = [8, 32], strides = [1, 1]} : vector<8x128xf32> to vector<8x32xf32>
    %24 = arith.mulf %15, %23 : vector<8x32xf32>
    %25 = arith.addf %22, %24 : vector<8x32xf32>
    %26 = math.tanh %25 : vector<8x32xf32>
    %27 = arith.subf %0, %26 : vector<8x32xf32>
    %28 = arith.mulf %21, %27 : vector<8x32xf32>
    %29 = arith.addf %26, %28 : vector<8x32xf32>
    %c0_12 = arith.constant 0 : index
    %c0_13 = arith.constant 0 : index
    %30 = vector.load %arg8[%c0_12, %c0_13] : memref<8x32xf32, #tpu.memory_space<vmem>>, vector<8x32xf32>
    tpu.vector_store %arg8[%c0_12, %c0_13], %29 {strides = array<i32>} : memref<8x32xf32, #tpu.memory_space<vmem>>, vector<8x32xf32>,
    %c0_14 = arith.constant 0 : index
    %c0_15 = arith.constant 0 : index
    %31 = vector.load %arg5[%c0_14, %c0_15] : memref<32x128xf32, #tpu.memory_space<vmem>>, vector<32x128xf32>
    %cst_16 = arith.constant dense<0.000000e+00> : vector<8x128xf32>
    %32 = tpu.matmul %29, %31, %cst_16 {dimension_numbers = #tpu.dot_dimension_numbers<[1], [0], [0], [1], [0, 0, 1, 1], [], []>} : vector<8x32xf32>, vector<32x128xf32>, vector<8x128xf32> -> vector<8x128xf32>
    %c0_17 = arith.constant 0 : index
    %c0_18 = arith.constant 0 : index
    %33 = vector.load %arg6[%c0_17, %c0_18] : memref<1x128xf32, #tpu.memory_space<vmem>>, vector<1x128xf32>
    %34 = vector.broadcast %33 : vector<1x128xf32> to vector<8x128xf32>
    %35 = arith.addf %32, %34 : vector<8x128xf32>
    %36 = arith.negf %35 : vector<8x128xf32>
    %37 = math.exp %36 : vector<8x128xf32>
    %cst_19 = arith.constant 1.000000e+00 : f32
    %38 = vector.broadcast %cst_19 : f32 to vector<8x128xf32>
    %39 = arith.addf %38, %37 : vector<8x128xf32>
    %40 = arith.divf %38, %39 : vector<8x128xf32>
    %c0_20 = arith.constant 0 : index
    %c0_21 = arith.constant 0 : index
    %41 = vector.load %arg7[%c0_20, %c0_21] : memref<8x128xf32, #tpu.memory_space<vmem>>, vector<8x128xf32>
    tpu.vector_store %arg7[%c0_20, %c0_21], %40 {strides = array<i32>} : memref<8x128xf32, #tpu.memory_space<vmem>>, vector<8x128xf32>,
    return
  }
}

</mosaic_0001>

<llo_original>
// kernel: policy_gru_forward.1
$region0: #{policy_gru_forward.1}
  #allocation0 [shape = 'u32[]', space=smem, size = 0x4, offset = 0x4, fixed_abs, tag = 'smem constant byte address 0x4 - core index']
  #allocation1 [shape = 'u32[144,128]{1,0:T(1,128)}', space=vmem, size = 0x12000, scoped, tag = 'internal scratch']
  %s0 = inlined_call_operand.hbm [shape: f32[8,16], index: 0, kind: input, shape index: {}]
  %s1 = inlined_call_operand.hbm [shape: f32[8,32], index: 1, kind: input, shape index: {}]
  %s2 = inlined_call_operand.hbm [shape: f32[16,128], index: 2, kind: input, shape index: {}]
  %s3 = inlined_call_operand.hbm [shape: f32[32,128], index: 3, kind: input, shape index: {}]
  %s4 = inlined_call_operand.vmem [shape: f32[1,128], index: 4, kind: input, shape index: {}]
  %s5 = inlined_call_operand.hbm [shape: f32[32,128], index: 5, kind: input, shape index: {}]
  %s6 = inlined_call_operand.vmem [shape: f32[1,128], index: 6, kind: input, shape index: {}]
  %s7 = inlined_call_operand.hbm [shape: f32[8,128], index: 7, kind: output, shape index: {0}]
  %s8 = inlined_call_operand.hbm [shape: f32[8,32], index: 8, kind: output, shape index: {1}]
  %9 = xla_tuple %s7, %s8
  %s10 = sld [smem:[#allocation0]]
  $region66: #{policy_gru_forward.1} parent=0
    _
  %s12 = ssub.s32 1, %s10
  %s13 = scalar_select 0, %s12, %s10
  $region1: #{policy_gru_forward.1} parent=0
    #allocation2 [shape = 'u8[4096]{0}', space=vmem, size = 0x1000, scoped, tag = 'input window, operand 0, single buffered']
    #allocation3 [shape = 's32[1]{0}', space=sflag, size = 0x4, scoped, tag = 'scoped memory for policy_gru_forward.1']
    #allocation4 [shape = 's32[1]{0}', space=sflag, size = 0x4, scoped, tag = 'scoped memory for policy_gru_forward.1']
    #allocation5 [shape = 'u8[4096]{0}', space=vmem, size = 0x1000, scoped, tag = 'input window, operand 1, single buffered']
    #allocation6 [shape = 's32[1]{0}', space=sflag, size = 0x4, scoped, tag = 'scoped memory for policy_gru_forward.1']
    #allocation7 [shape = 'u8[8192]{0}', space=vmem, size = 0x2000, scoped, tag = 'input window, operand 2, single buffered']
    #allocation8 [shape = 'u8[16384]{0}', space=vmem, size = 0x4000, scoped, tag = 'input window, operand 3, single buffered']
    #allocation9 [shape = 's32[1]{0}', space=sflag, size = 0x4, scoped, tag = 'scoped memory for policy_gru_forward.1']
    #allocation10 [shape = 'u8[16384]{0}', space=vmem, size = 0x4000, scoped, tag = 'input window, operand 5, single buffered']
    #allocation11 [shape = 'u8[4096]{0}', space=vmem, size = 0x1000, scoped, tag = 'output window, operand 0, single buffered']
    #allocation12 [shape = 'u8[4096]{0}', space=vmem, size = 0x1000, scoped, tag = 'output window, operand 1, single buffered']
    #allocation13 [shape = 's32[1]{0}', space=sflag, size = 0x4, scoped, tag = 'scoped memory for policy_gru_forward.1']
    %14 = vsyncpa [#allocation3], 0
    %15 = vsyncpa [#allocation6], 0
    %16 = vsyncpa [#allocation9], 0
    %17 = vsyncpa [#allocation4], 0
    %18 = vsyncpa [#allocation13], 0
    // Predicated region
    $region2: #{policy_gru_forward.1} parent=1 // pred_check
      _
    $region3: #{policy_gru_forward.1} parent=1 // pred_check_branch
      %20 = sbr.rel (0) target = $region5
    $region4: #{policy_gru_forward.1} parent=1 // pred_region
      %s22 = ssub.s32 128, 128
      %23 = vsyncadd [#allocation3], %s22
      %s25 = sshll.u32 [#allocation2], 4
      %s26 = int_to_ptr.vmem [resolvable:$true] %s25
      %28 = dma.hbm_to_vmem [thread:$0]  %s0, 128, %s26, [#allocation3]
    $region5: #{policy_gru_forward.1} parent=1 // pred_fallthru
      _
    // Predicated region
    $region6: #{policy_gru_forward.1} parent=1 // pred_check
      _
    $region7: #{policy_gru_forward.1} parent=1 // pred_check_branch
      %30 = sbr.rel (0) target = $region9
    $region8: #{policy_gru_forward.1} parent=1 // pred_region
      %s32 = ssub.s32 128, 128
      %33 = vsyncadd [#allocation6], %s32
      %s35 = sshll.u32 [#allocation5], 4
      %s36 = int_to_ptr.vmem [resolvable:$true] %s35
      %38 = dma.hbm_to_vmem [thread:$0]  %s1, 128, %s36, [#allocation6]
    $region9: #{policy_gru_forward.1} parent=1 // pred_fallthru
      _
    // Predicated region
    $region10: #{policy_gru_forward.1} parent=1 // pred_check
      _
    $region11: #{policy_gru_forward.1} parent=1 // pred_check_branch
      %40 = sbr.rel (0) target = $region13
    $region12: #{policy_gru_forward.1} parent=1 // pred_region
      %s42 = ssub.s32 256, 256
      %43 = vsyncadd [#allocation6], %s42
      %s44 = sshll.u32 [#allocation7], 4
      %s45 = int_to_ptr.vmem [resolvable:$true] %s44
      %50 = dma.hbm_to_vmem [thread:$0]  %s2, 256, %s45, [#allocation6], 128, 128, 8
    $region13: #{policy_gru_forward.1} parent=1 // pred_fallthru
      _
    // Predicated region
    $region14: #{policy_gru_forward.1} parent=1 // pred_check
      _
    $region15: #{policy_gru_forward.1} parent=1 // pred_check_branch
      %52 = sbr.rel (0) target = $region17
    $region16: #{policy_gru_forward.1} parent=1 // pred_region
      %s54 = ssub.s32 512, 512
      %55 = vsyncadd [#allocation9], %s54
      %s56 = sshll.u32 [#allocation8], 4
      %s57 = int_to_ptr.vmem [resolvable:$true] %s56
      %62 = dma.hbm_to_vmem [thread:$0]  %s3, 512, %s57, [#allocation9], 128, 128, 8
    $region17: #{policy_gru_forward.1} parent=1 // pred_fallthru
      _
    // Predicated region
    $region18: #{policy_gru_forward.1} parent=1 // pred_check
      _
    $region19: #{policy_gru_forward.1} parent=1 // pred_check_branch
      %64 = sbr.rel (0) target = $region21
    $region20: #{policy_gru_forward.1} parent=1 // pred_region
      _
    $region21: #{policy_gru_forward.1} parent=1 // pred_fallthru
      _
    // Predicated region
    $region22: #{policy_gru_forward.1} parent=1 // pred_check
      _
    $region23: #{policy_gru_forward.1} parent=1 // pred_check_branch
      %66 = sbr.rel (0) target = $region25
    $region24: #{policy_gru_forward.1} parent=1 // pred_region
      %s68 = ssub.s32 512, 512
      %69 = vsyncadd [#allocation9], %s68
      %s70 = sshll.u32 [#allocation10], 4
      %s71 = int_to_ptr.vmem [resolvable:$true] %s70
      %76 = dma.hbm_to_vmem [thread:$0]  %s5, 512, %s71, [#allocation9], 128, 128, 8
    $region25: #{policy_gru_forward.1} parent=1 // pred_fallthru
      _
    // Predicated region
    $region26: #{policy_gru_forward.1} parent=1 // pred_check
      _
    $region27: #{policy_gru_forward.1} parent=1 // pred_check_branch
      %78 = sbr.rel (0) target = $region29
    $region28: #{policy_gru_forward.1} parent=1 // pred_region
      _
    $region29: #{policy_gru_forward.1} parent=1 // pred_fallthru
      _
    // Predicated region
    $region30: #{policy_gru_forward.1} parent=1 // pred_check
      _
    $region31: #{policy_gru_forward.1} parent=1 // pred_check_branch
      %80 = sbr.rel (0) target = $region33
    $region32: #{policy_gru_forward.1} parent=1 // pred_region
      %81 = dma.done [#allocation3], 128
    $region33: #{policy_gru_forward.1} parent=1 // pred_fallthru
      _
    // Predicated region
    $region34: #{policy_gru_forward.1} parent=1 // pred_check
      _
    $region35: #{policy_gru_forward.1} parent=1 // pred_check_branch
      %83 = sbr.rel (0) target = $region37
    $region36: #{policy_gru_forward.1} parent=1 // pred_region
      %84 = dma.done [#allocation6], 128
    $region37: #{policy_gru_forward.1} parent=1 // pred_fallthru
      _
    // Predicated region
    $region38: #{policy_gru_forward.1} parent=1 // pred_check
      _
    $region39: #{policy_gru_forward.1} parent=1 // pred_check_branch
      %86 = sbr.rel (0) target = $region41
    $region40: #{policy_gru_forward.1} parent=1 // pred_region
      %87 = dma.done [#allocation6], 256
    $region41: #{policy_gru_forward.1} parent=1 // pred_fallthru
      _
    // Predicated region
    $region42: #{policy_gru_forward.1} parent=1 // pred_check
      _
    $region43: #{policy_gru_forward.1} parent=1 // pred_check_branch
      %89 = sbr.rel (0) target = $region45
    $region44: #{policy_gru_forward.1} parent=1 // pred_region
      %90 = dma.done [#allocation9], 512
    $region45: #{policy_gru_forward.1} parent=1 // pred_fallthru
      _
    // Predicated region
    $region46: #{policy_gru_forward.1} parent=1 // pred_check
      _
    $region47: #{policy_gru_forward.1} parent=1 // pred_check_branch
      %92 = sbr.rel (0) target = $region49
    $region48: #{policy_gru_forward.1} parent=1 // pred_region
      %93 = dma.done [#allocation9], 512
    $region49: #{policy_gru_forward.1} parent=1 // pred_fallthru
      _
    %v94 = vld [vmem:[#allocation5] sm:$0xff]
    %v95 = vld [vmem:[#allocation2] sm:$0xff]
    %v96 = vld [vmem:[#allocation7] sm:$0xff]
    %v97 = vld [vmem:[#allocation7 + $0x8] sm:$0xff]
    %v98 = vld [vmem:[#allocation8] sm:$0xff]
    %v99 = vld [vmem:[#allocation8 + $0x8] sm:$0xff]
    %v100 = vld [vmem:[#allocation8 + $0x10] sm:$0xff]
    %v101 = vld [vmem:[#allocation8 + $0x18] sm:$0xff]
    %vm102 = vcmask 261120
    %v104 = vsel %vm102, %v94, 0
    %106 = vmatprep.subr.mxu0 0.0
    %107 = vmatpush1.msra.mxu0 0.0
    %108 = vmatprep.subr.mxu0 0.0
    %109 = vmatpush1.msra.mxu0 0.0
    %110 = vmatprep.subr.mxu0 0.0
    %111 = vmatpush1.msra.mxu0 0.0
    %112 = vmatprep.subr.mxu0 0.0
    %113 = vmatpush1.msra.mxu0 0.0
    %114 = vmatprep.subr.mxu0 0.0
    %115 = vmatpush1.msra.mxu0 0.0
    %116 = vmatprep.subr.mxu0 0.0
    %117 = vmatpush1.msra.mxu0 0.0
    %118 = vmatprep.subr.mxu0 0.0
    %119 = vmatpush1.msra.mxu0 0.0
    %120 = vmatprep.subr.mxu0 0.0
    %121 = vmatpush1.msra.mxu0 0.0
    %122 = vmatprep.subr.mxu0 0.0
    %123 = vmatpush1.msra.mxu0 0.0
    %124 = vmatprep.subr.mxu0 0.0
    %125 = vmatpush1.msra.mxu0 0.0
    %126 = vmatprep.subr.mxu0 0.0
    %127 = vmatpush1.msra.mxu0 0.0
    %128 = vmatprep.subr.mxu0 0.0
    %129 = vmatpush1.msra.mxu0 0.0
    %130 = vmatprep.subr.mxu0 0.0
    %131 = vmatpush1.msra.mxu0 %v101
    %132 = vmatprep.subr.mxu0 0.0
    %133 = vmatpush1.msra.mxu0 %v100
    %134 = vmatprep.subr.mxu0 0.0
    %135 = vmatpush1.msra.mxu0 %v99
    %136 = vmatprep.subr.mxu0 0.0
    %137 = vmatpush1.msra.mxu0 %v98
    %138 = vmatprep.subr.mxu0 0.0
    %139 = vmatpush2.msra.mxu0 0.0
    %140 = vmatprep.subr.mxu0 0.0
    %141 = vmatpush2.msra.mxu0 0.0
    %142 = vmatprep.subr.mxu0 0.0
    %143 = vmatpush2.msra.mxu0 0.0
    %144 = vmatprep.subr.mxu0 0.0
    %145 = vmatpush2.msra.mxu0 0.0
    %146 = vmatprep.subr.mxu0 0.0
    %147 = vmatpush2.msra.mxu0 0.0
    %148 = vmatprep.subr.mxu0 0.0
    %149 = vmatpush2.msra.mxu0 0.0
    %150 = vmatprep.subr.mxu0 0.0
    %151 = vmatpush2.msra.mxu0 0.0
    %152 = vmatprep.subr.mxu0 0.0
    %153 = vmatpush2.msra.mxu0 0.0
    %154 = vmatprep.subr.mxu0 0.0
    %155 = vmatpush2.msra.mxu0 0.0
    %156 = vmatprep.subr.mxu0 0.0
    %157 = vmatpush2.msra.mxu0 0.0
    %158 = vmatprep.subr.mxu0 0.0
    %159 = vmatpush2.msra.mxu0 0.0
    %160 = vmatprep.subr.mxu0 0.0
    %161 = vmatpush2.msra.mxu0 0.0
    %162 = vmatprep.subr.mxu0 0.0
    %163 = vmatpush2.msra.mxu0 0.0
    %164 = vmatprep.subr.mxu0 0.0
    %165 = vmatpush2.msra.mxu0 0.0
    %166 = vmatprep.subr.mxu0 0.0
    %167 = vmatpush2.msra.mxu0 0.0
    %168 = vmatprep.subr.mxu0 0.0
    %169 = vmatpush2.msra.mxu0 0.0
    %170 = vmatprep.mubr.f32.mxu0 0.0
    %171 = vmatmul.mubr.f32.gmra.mxu0 %v104
    %v172 = vpop.f32.mrf.mxu0
    %v173 = vadd.f32 0.0, %v172
    %v174 = vpop.f32.mrf.mxu0
    %175 = vdwg.mxu0
    %vm176 = vcmask 130048
    %v178 = vsel %vm176, %v95, 0
    %180 = vmatprep.subr.mxu0 0.0
    %181 = vmatpush1.msra.mxu0 0.0
    %182 = vmatprep.subr.mxu0 0.0
    %183 = vmatpush1.msra.mxu0 0.0
    %184 = vmatprep.subr.mxu0 0.0
    %185 = vmatpush1.msra.mxu0 0.0
    %186 = vmatprep.subr.mxu0 0.0
    %187 = vmatpush1.msra.mxu0 0.0
    %188 = vmatprep.subr.mxu0 0.0
    %189 = vmatpush1.msra.mxu0 0.0
    %190 = vmatprep.subr.mxu0 0.0
    %191 = vmatpush1.msra.mxu0 0.0
    %192 = vmatprep.subr.mxu0 0.0
    %193 = vmatpush1.msra.mxu0 0.0
    %194 = vmatprep.subr.mxu0 0.0
    %195 = vmatpush1.msra.mxu0 0.0
    %196 = vmatprep.subr.mxu0 0.0
    %197 = vmatpush1.msra.mxu0 0.0
    %198 = vmatprep.subr.mxu0 0.0
    %199 = vmatpush1.msra.mxu0 0.0
    %200 = vmatprep.subr.mxu0 0.0
    %201 = vmatpush1.msra.mxu0 0.0
    %202 = vmatprep.subr.mxu0 0.0
    %203 = vmatpush1.msra.mxu0 0.0
    %204 = vmatprep.subr.mxu0 0.0
    %205 = vmatpush1.msra.mxu0 0.0
    %206 = vmatprep.subr.mxu0 0.0
    %207 = vmatpush1.msra.mxu0 0.0
    %208 = vmatprep.subr.mxu0 0.0
    %209 = vmatpush1.msra.mxu0 %v97
    %210 = vmatprep.subr.mxu0 0.0
    %211 = vmatpush1.msra.mxu0 %v96
    %212 = vmatprep.subr.mxu0 0.0
    %213 = vmatpush2.msra.mxu0 0.0
    %214 = vmatprep.subr.mxu0 0.0
    %215 = vmatpush2.msra.mxu0 0.0
    %216 = vmatprep.subr.mxu0 0.0
    %217 = vmatpush2.msra.mxu0 0.0
    %218 = vmatprep.subr.mxu0 0.0
    %219 = vmatpush2.msra.mxu0 0.0
    %220 = vmatprep.subr.mxu0 0.0
    %221 = vmatpush2.msra.mxu0 0.0
    %222 = vmatprep.subr.mxu0 0.0
    %223 = vmatpush2.msra.mxu0 0.0
    %224 = vmatprep.subr.mxu0 0.0
    %225 = vmatpush2.msra.mxu0 0.0
    %226 = vmatprep.subr.mxu0 0.0
    %227 = vmatpush2.msra.mxu0 0.0
    %228 = vmatprep.subr.mxu0 0.0
    %229 = vmatpush2.msra.mxu0 0.0
    %230 = vmatprep.subr.mxu0 0.0
    %231 = vmatpush2.msra.mxu0 0.0
    %232 = vmatprep.subr.mxu0 0.0
    %233 = vmatpush2.msra.mxu0 0.0
    %234 = vmatprep.subr.mxu0 0.0
    %235 = vmatpush2.msra.mxu0 0.0
    %236 = vmatprep.subr.mxu0 0.0
    %237 = vmatpush2.msra.mxu0 0.0
    %238 = vmatprep.subr.mxu0 0.0
    %239 = vmatpush2.msra.mxu0 0.0
    %240 = vmatprep.subr.mxu0 0.0
    %241 = vmatpush2.msra.mxu0 0.0
    %242 = vmatprep.subr.mxu0 0.0
    %243 = vmatpush2.msra.mxu0 0.0
    %244 = vmatprep.mubr.f32.mxu0 0.0
    %245 = vmatmul.mubr.f32.gmra.mxu0 %v178
    %v246 = vpop.f32.mrf.mxu0
    %v247 = vadd.f32 %v173, %v246
    %v248 = vpop.f32.mrf.mxu0
    %249 = vdwg.mxu0
    %v250 = vld [vmem:[%s4] sm:$0x1]
    %v252 = vlaneseq
    %v253 = vshrl.u32 %v252, 7
    %v254 = vsub.s32 0, %v253
    %v255 = vrot.slane %v250, %v254
    %v257 = vadd.f32 %v247, %v255
    %v258 = vxor.u32 %v257, 2147483648
    %v259 = vmul.f32 %v258, 1.442695
    %v260 = vpow.pop %v259
    %v261 = vadd.f32 %v260, 1.0
    %v262 = vrcp.pop %v261
    %v263 = vmul.f32 1.0, %v262
    %265 = vrot.lane.b32.xlu0 %v257, 32
    %v266 = vpop.permute.xlu0 %265
    %v268 = vmul.f32 %v263, %v266
    %270 = vrot.lane.b32.xlu0 %v268, 64
    %v271 = vpop.permute.xlu0 %270
    %v273 = vadd.f32 %v257, %v271
    %v274 = vtanh.pop %v273
    %276 = vrot.lane.b32.xlu0 %v274, 64
    %v277 = vpop.permute.xlu0 %276
    %v279 = vsub.f32 %v94, %v277
    %281 = vrot.lane.b32.xlu0 %v279, 32
    %v282 = vpop.permute.xlu0 %281
    %v284 = vmul.f32 %v263, %v282
    %286 = vrot.lane.b32.xlu0 %v284, 32
    %v287 = vpop.permute.xlu0 %286
    %v289 = vadd.f32 %v274, %v287
    %291 = vrot.lane.b32.xlu0 %v289, 64
    %v292 = vpop.permute.xlu0 %291
    %294 = vst.msk [vmem:[#allocation12] sm:$0xff] %vm102, %v292
    %v295 = vld [vmem:[#allocation10] sm:$0xff]
    %v296 = vld [vmem:[#allocation10 + $0x8] sm:$0xff]
    %v297 = vld [vmem:[#allocation10 + $0x10] sm:$0xff]
    %v298 = vld [vmem:[#allocation10 + $0x18] sm:$0xff]
    %v299 = vld [vmem:[%s6] sm:$0x1]
    %v301 = vlaneseq
    %v302 = vshrl.u32 %v301, 7
    %v303 = vsub.s32 0, %v302
    %v304 = vrot.slane %v299, %v303
    %v306 = vsel %vm102, %v292, 0
    %308 = vmatprep.subr.mxu0 0.0
    %309 = vmatpush1.msra.mxu0 0.0
    %310 = vmatprep.subr.mxu0 0.0
    %311 = vmatpush1.msra.mxu0 0.0
    %312 = vmatprep.subr.mxu0 0.0
    %313 = vmatpush1.msra.mxu0 0.0
    %314 = vmatprep.subr.mxu0 0.0
    %315 = vmatpush1.msra.mxu0 0.0
    %316 = vmatprep.subr.mxu0 0.0
    %317 = vmatpush1.msra.mxu0 0.0
    %318 = vmatprep.subr.mxu0 0.0
    %319 = vmatpush1.msra.mxu0 0.0
    %320 = vmatprep.subr.mxu0 0.0
    %321 = vmatpush1.msra.mxu0 0.0
    %322 = vmatprep.subr.mxu0 0.0
    %323 = vmatpush1.msra.mxu0 0.0
    %324 = vmatprep.subr.mxu0 0.0
    %325 = vmatpush1.msra.mxu0 0.0
    %326 = vmatprep.subr.mxu0 0.0
    %327 = vmatpush1.msra.mxu0 0.0
    %328 = vmatprep.subr.mxu0 0.0
    %329 = vmatpush1.msra.mxu0 0.0
    %330 = vmatprep.subr.mxu0 0.0
    %331 = vmatpush1.msra.mxu0 0.0
    %332 = vmatprep.subr.mxu0 0.0
    %333 = vmatpush1.msra.mxu0 %v298
    %334 = vmatprep.subr.mxu0 0.0
    %335 = vmatpush1.msra.mxu0 %v297
    %336 = vmatprep.subr.mxu0 0.0
    %337 = vmatpush1.msra.mxu0 %v296
    %338 = vmatprep.subr.mxu0 0.0
    %339 = vmatpush1.msra.mxu0 %v295
    %340 = vmatprep.subr.mxu0 0.0
    %341 = vmatpush2.msra.mxu0 0.0
    %342 = vmatprep.subr.mxu0 0.0
    %343 = vmatpush2.msra.mxu0 0.0
    %344 = vmatprep.subr.mxu0 0.0
    %345 = vmatpush2.msra.mxu0 0.0
    %346 = vmatprep.subr.mxu0 0.0
    %347 = vmatpush2.msra.mxu0 0.0
    %348 = vmatprep.subr.mxu0 0.0
    %349 = vmatpush2.msra.mxu0 0.0
    %350 = vmatprep.subr.mxu0 0.0
    %351 = vmatpush2.msra.mxu0 0.0
    %352 = vmatprep.subr.mxu0 0.0
    %353 = vmatpush2.msra.mxu0 0.0
    %354 = vmatprep.subr.mxu0 0.0
    %355 = vmatpush2.msra.mxu0 0.0
    %356 = vmatprep.subr.mxu0 0.0
    %357 = vmatpush2.msra.mxu0 0.0
    %358 = vmatprep.subr.mxu0 0.0
    %359 = vmatpush2.msra.mxu0 0.0
    %360 = vmatprep.subr.mxu0 0.0
    %361 = vmatpush2.msra.mxu0 0.0
    %362 = vmatprep.subr.mxu0 0.0
    %363 = vmatpush2.msra.mxu0 0.0
    %364 = vmatprep.subr.mxu0 0.0
    %365 = vmatpush2.msra.mxu0 0.0
    %366 = vmatprep.subr.mxu0 0.0
    %367 = vmatpush2.msra.mxu0 0.0
    %368 = vmatprep.subr.mxu0 0.0
    %369 = vmatpush2.msra.mxu0 0.0
    %370 = vmatprep.subr.mxu0 0.0
    %371 = vmatpush2.msra.mxu0 0.0
    %372 = vmatprep.mubr.f32.mxu0 0.0
    %373 = vmatmul.mubr.f32.gmra.mxu0 %v306
    %v374 = vpop.f32.mrf.mxu0
    %v375 = vadd.f32 %v304, %v374
    %v376 = vpop.f32.mrf.mxu0
    %377 = vdwg.mxu0
    %v378 = vxor.u32 %v375, 2147483648
    %v379 = vmul.f32 %v378, 1.442695
    %v380 = vpow.pop %v379
    %v381 = vadd.f32 %v380, 1.0
    %v382 = vrcp.pop %v381
    %v383 = vmul.f32 1.0, %v382
    %384 = vst [vmem:[#allocation11] sm:$0xff] %v383
    // Predicated region
    $region50: #{policy_gru_forward.1} parent=1 // pred_check
      _
    $region51: #{policy_gru_forward.1} parent=1 // pred_check_branch
      %386 = sbr.rel (0) target = $region53
    $region52: #{policy_gru_forward.1} parent=1 // pred_region
      %s388 = ssub.s32 128, 128
      %389 = vsyncadd [#allocation4], %s388
      %s391 = sshll.u32 [#allocation11], 4
      %s392 = int_to_ptr.vmem [resolvable:$true] %s391
      %394 = dma.vmem_to_hbm [thread:$0]  %s392, 128, %s7, [#allocation4]
    $region53: #{policy_gru_forward.1} parent=1 // pred_fallthru
      _
    // Predicated region
    $region54: #{policy_gru_forward.1} parent=1 // pred_check
      _
    $region55: #{policy_gru_forward.1} parent=1 // pred_check_branch
      %396 = sbr.rel (0) target = $region57
    $region56: #{policy_gru_forward.1} parent=1 // pred_region
      %s398 = ssub.s32 128, 128
      %399 = vsyncadd [#allocation13], %s398
      %s401 = sshll.u32 [#allocation12], 4
      %s402 = int_to_ptr.vmem [resolvable:$true] %s401
      %404 = dma.vmem_to_hbm [thread:$0]  %s402, 128, %s8, [#allocation13]
    $region57: #{policy_gru_forward.1} parent=1 // pred_fallthru
      _
    // Predicated region
    $region58: #{policy_gru_forward.1} parent=1 // pred_check
      _
    $region59: #{policy_gru_forward.1} parent=1 // pred_check_branch
      %406 = sbr.rel (0) target = $region61
    $region60: #{policy_gru_forward.1} parent=1 // pred_region
      %407 = dma.done [#allocation4], 128
    $region61: #{policy_gru_forward.1} parent=1 // pred_fallthru
      _
    // Predicated region
    $region62: #{policy_gru_forward.1} parent=1 // pred_check
      _
    $region63: #{policy_gru_forward.1} parent=1 // pred_check_branch
      %409 = sbr.rel (0) target = $region65
    $region64: #{policy_gru_forward.1} parent=1 // pred_region
      %410 = dma.done [#allocation13], 128
    $region65: #{policy_gru_forward.1} parent=1 // pred_fallthru
      _
    %411 = vsyncpa [#allocation3], 1
    %412 = vsyncpa [#allocation6], 1
    %413 = vsyncpa [#allocation9], 1
    %414 = vsyncpa [#allocation4], 1
    %415 = vsyncpa [#allocation13], 1

</llo_original>
